<compile_context>
chip_gen: v6e
topology: v6e:2x2x1
jax: 0.10.0
libtpu: 0.0.40
codegen_flags: <defaults>
</compile_context>

<pallas_src>
import functools

import jax
import jax.numpy as jnp
from jax import lax
from jax.experimental import pallas as pl
from jax.experimental.pallas import tpu as pltpu

EPS = 1e-12         # F.normalize default eps
BN_EPS = 1e-5       # BatchNorm1d default eps


def netvlad_kernel(x_ref, sc_ref, cn2_ref, bnsc_ref, bnsh_ref, out_ref, acc_ref,
                   *, num_clusters, block_n, tile_s, valid_s):
    # x_ref   : (Nb, C, St)   activations (f32 or bf16), one batch block / S tile
    # sc_ref  : (2K, C) f32   stacked [conv_w ; centroids]
    # cn2_ref : (K, 1)  f32   precomputed ||c_k||^2
    # bnsc_ref: (K, C)  f32   folded BatchNorm scale (gamma / sqrt(var + eps))
    # bnsh_ref: (K, C)  f32   folded BatchNorm shift (beta - mean * scale)
    # out_ref : (Nb, K, C)    final normalized VLAD vectors for this batch block
    # acc_ref : (Nb, K, C) f32 partial-VLAD accumulator (persists across S tiles)
    K = num_clusters
    s_idx = pl.program_id(1)

    @pl.when(s_idx == 0)
    def _init():
        acc_ref[...] = jnp.zeros_like(acc_ref)

    stacked = sc_ref[...]                       # (2K, C) f32
    cent = stacked[K:, :]                       # (K, C)  f32 (used for correction)
    cnorm2 = cn2_ref[...]                       # (K, 1)  f32

    # Validity mask for spatial columns that were zero-padded on the host.
    col_valid = None
    if valid_s is not None:
        col = s_idx * tile_s + lax.broadcasted_iota(jnp.int32, (1, tile_s), 1)
        col_valid = col < valid_s               # (1, St) bool

    for n in range(block_n):                    # Nb is small & static
        x = x_ref[n]                            # (C, St), f32 or bf16
        # MXU LHS in the activation dtype (tiny (2K,C) cast; no-op for f32).
        stacked_mm = stacked.astype(x.dtype)

        # 1) per-position descriptor norm (the only (C,St)-sized VPU work)
        xsq = jnp.sum(jnp.square(x.astype(jnp.float32)), axis=0,
                      keepdims=True)                            # (1, St)
        inv_xn = lax.rsqrt(jnp.maximum(xsq, EPS * EPS))         # 1/max(||x||,eps)
        xnsq = xsq * jnp.square(inv_xn)                         # ||xn_s||^2

        # 2+4) single stacked MXU matmul: rows 0:K -> conv logits, K:2K -> cent.xn
        p = lax.dot_general(stacked_mm, x, (((1,), (0,)), ((), ())),
                            preferred_element_type=jnp.float32)  # (2K, St)
        p = p * inv_xn                          # fold descriptor normalization
        logits = p[:K]                          # (K, St)
        cx = p[K:]                              # (K, St)

        # 3) softmax numerator only (denominator cancels, see below)
        m = jnp.max(logits, axis=0, keepdims=True)
        e = jnp.exp(logits - m)                                 # (K, St)
        se = jnp.sum(e, axis=0, keepdims=True)                  # (1, St)

        # 4+5) per-position residual norm without the (K,St,C) cube:
        #   pnorm^2[s] = sum_k sa^2 * ||xn_s - c_k||^2,  sa = e/se
        # and the F.normalize-clamped per-column weight scale
        #   w[k,s] = sa[k,s]/max(pnorm,eps) = e[k,s]*rsqrt(max(sum_k e^2*d2,(eps*se)^2))
        d2 = jnp.maximum(xnsq - 2.0 * cx + cnorm2, 0.0)         # (K, St)
        t = jnp.sum(jnp.square(e) * d2, axis=0, keepdims=True)  # (1, St)
        g = lax.rsqrt(jnp.maximum(t, jnp.square(EPS * se)))     # (1, St)
        if col_valid is not None:
            g = jnp.where(col_valid, g, 0.0)    # padded columns contribute nothing

        # 6) aggregate this spatial tile:
        #    vlad[k,c] += sum_s w[k,s]*xn[c,s] - cent[k,c]*sum_s w[k,s]
        w = e * g                                               # (K, St)
        wsum = jnp.sum(w, axis=1, keepdims=True)                # (K, 1)
        ws_x = (w * inv_xn).astype(x.dtype)     # fold inv_xn; cast for MXU
        wx = lax.dot_general(ws_x, x, (((1,), (1,)), ((), ())),
                             preferred_element_type=jnp.float32)  # (K, C)
        acc_ref[n] += wx - cent * wsum

    # 7-9) finalize on the last spatial tile
    @pl.when(s_idx == pl.num_programs(1) - 1)
    def _finalize():
        vlad = acc_ref[...]                                     # (Nb, K, C)
        # 7) intra-normalization (L2 over C, per cluster)
        inv_v = lax.rsqrt(jnp.maximum(
            jnp.sum(vlad * vlad, axis=2, keepdims=True), EPS * EPS))
        vlad = vlad * inv_v
        # 8) BatchNorm1d (eval mode, folded) over the flattened K*C features
        vlad = vlad * bnsc_ref[...] + bnsh_ref[...]
        # 9) final L2 normalization over the whole K*C vector
        ssq = jnp.sum(jnp.sum(vlad * vlad, axis=2, keepdims=True),
                      axis=1, keepdims=True)                    # (Nb, 1, 1)
        inv_f = lax.rsqrt(jnp.maximum(ssq, EPS * EPS))
        out_ref[...] = (vlad * inv_f).astype(out_ref.dtype)


def _pick_tile_s(s_pad, cap=4096):
    """Largest multiple-of-128 divisor of s_pad up to `cap` (s_pad % 128 == 0)."""
    if s_pad <= cap:
        return s_pad
    best = 128
    t = 128
    while t <= cap:
        if s_pad % t == 0:
            best = t
        t += 128
    return best


def _pick_block_n(n, per_n_bytes, target_bytes=1 << 20, cap=8):
    """Batch elements per grid step: reach ~1 MiB x-blocks, divide N, cap small."""
    want = max(1, min(cap, n, target_bytes // max(per_n_bytes, 1)))
    while n % want:
        want -= 1
    return max(want, 1)


@functools.partial(jax.jit, static_argnames=("num_clusters", "tile_s", "block_n"))
def netvlad_forward(x_nchw, conv_w, centroids, bn_scale, bn_shift, *,
                    num_clusters, tile_s=None, block_n=None):
    """x_nchw: (N, C, H, W) float32 or bfloat16.  Returns (N, K*C) float32."""
    N, C, H, W = x_nchw.shape
    K = num_clusters
    S = H * W

    # Free (metadata-only) reshape: NCHW -> (N, C, S); the kernel consumes the
    # (C, S) layout natively (no host-side transpose of the activations).
    x_ncs = x_nchw.reshape(N, C, S)

    # Pad S up to a multiple of 128 so every tile is lane-dense; padded columns
    # are masked inside the kernel.
    S_pad = -(-S // 128) * 128
    if S_pad != S:
        x_ncs = jnp.pad(x_ncs, ((0, 0), (0, 0), (0, S_pad - S)))
    valid_s = S if S_pad != S else None

    if tile_s is None:
        tile_s = _pick_tile_s(S_pad)
    assert S_pad % tile_s == 0 and tile_s % 128 == 0, (S_pad, tile_s)

    itemsize = jnp.dtype(x_ncs.dtype).itemsize
    if block_n is None:
        block_n = _pick_block_n(N, C * tile_s * itemsize)
    assert N % block_n == 0, (N, block_n)

    # Host-side (loop-invariant) prep: stacked MXU LHS and centroid norms.
    stacked = jnp.concatenate([conv_w, centroids], axis=0)            # (2K, C)
    cnorm2 = jnp.sum(centroids * centroids, axis=1, keepdims=True)    # (K, 1)

    grid = (N // block_n, S_pad // tile_s)
    kernel = functools.partial(netvlad_kernel, num_clusters=K,
                               block_n=block_n, tile_s=tile_s, valid_s=valid_s)

    out = pl.pallas_call(
        kernel,
        out_shape=jax.ShapeDtypeStruct((N, K, C), jnp.float32),
        grid_spec=pltpu.PrefetchScalarGridSpec(
            num_scalar_prefetch=0,
            grid=grid,
            in_specs=[
                pl.BlockSpec((block_n, C, tile_s), lambda nb, s: (nb, 0, s)),
                pl.BlockSpec((2 * K, C), lambda nb, s: (0, 0)),
                pl.BlockSpec((K, 1), lambda nb, s: (0, 0)),
                pl.BlockSpec((K, C), lambda nb, s: (0, 0)),
                pl.BlockSpec((K, C), lambda nb, s: (0, 0)),
            ],
            out_specs=pl.BlockSpec((block_n, K, C), lambda nb, s: (nb, 0, 0)),
            scratch_shapes=[pltpu.VMEM((block_n, K, C), jnp.float32)],
        ),
        compiler_params=pltpu.CompilerParams(
            dimension_semantics=("parallel", "arbitrary"),
            vmem_limit_bytes=32 * 1024 * 1024,
        ),
    )(x_ncs, stacked, cnorm2, bn_scale, bn_shift)

    # (N, K, C) -> (N, K*C) is a contiguous, no-copy reshape; C=128 already
    # gives full-lane (unmasked) stores inside the kernel.
    return out.reshape(N, K * C)


def netvlad_reference(x_nchw, conv_w, centroids, bn_scale, bn_shift):
    """Pure-JAX mirror of the PyTorch forward (eval-mode BN)."""
    N, C, H, W = x_nchw.shape
    S = H * W
    x = x_nchw / jnp.maximum(
        jnp.sqrt(jnp.sum(x_nchw ** 2, axis=1, keepdims=True)), EPS)
    xf = x.reshape(N, C, S)
    logits = jnp.einsum("kc,ncs->nks", conv_w, xf)
    sa = jax.nn.softmax(logits, axis=1)
    resid = xf[:, None, :, :] - centroids[None, :, :, None]          # (N,K,C,S)
    resid = resid * sa[:, :, None, :]
    pn = jnp.sqrt(jnp.sum(resid ** 2, axis=(1, 2), keepdims=True))
    resid = resid / jnp.maximum(pn, EPS)
    vlad = resid.sum(-1)                                             # (N,K,C)
    vn = jnp.sqrt(jnp.sum(vlad ** 2, axis=2, keepdims=True))
    vlad = vlad / jnp.maximum(vn, EPS)
    vlad = vlad.reshape(N, -1)
    vlad = vlad * bn_scale.reshape(-1) + bn_shift.reshape(-1)
    fn = jnp.sqrt(jnp.sum(vlad ** 2, axis=1, keepdims=True))
    return vlad / jnp.maximum(fn, EPS)


if __name__ == "__main__":
    # shapes consistent with the module: C == vset_dim == dim == 128, K == 8
    N, C, H, W = 2, 128, 16, 16          # S = 256
    K = 8  # num_clusters

    key = jax.random.PRNGKey(0)
    kx, kw, kc = jax.random.split(key, 3)

    x = jax.random.normal(kx, (N, C, H, W), dtype=jnp.float32)
    # Conv2d(vset_dim, K, 1, bias=False) weight -> (K, C) after squeezing 1x1
    conv_w = jax.random.uniform(kw, (K, C), dtype=jnp.float32,
                                minval=-0.1, maxval=0.1)
    # centroids = torch.rand(K, vset_dim)
    centroids = jax.random.uniform(kc, (K, C), dtype=jnp.float32)

    # BatchNorm1d(K*C) default params (eval mode), folded into scale/shift
    # TODO(synk): training-mode BatchNorm (batch statistics) is not reproduced.
    gamma = jnp.ones((K, C), jnp.float32)
    beta = jnp.zeros((K, C), jnp.float32)
    running_mean = jnp.zeros((K, C), jnp.float32)
    running_var = jnp.ones((K, C), jnp.float32)
    bn_scale = gamma / jnp.sqrt(running_var + BN_EPS)
    bn_shift = beta - running_mean * bn_scale

    ref = netvlad_reference(x, conv_w, centroids, bn_scale, bn_shift)

    # default path (single S tile, batch-blocked)
    out = netvlad_forward(x, conv_w, centroids, bn_scale, bn_shift,
                          num_clusters=K)
    out = jax.block_until_ready(out)
    assert out.shape == (N, K * C)
    assert jnp.allclose(out, ref, rtol=1e-4, atol=2e-5), (
        float(jnp.max(jnp.abs(out - ref))))

    # forced multi-tile S path (exercises the persistent accumulator across grid steps)
    out2 = netvlad_forward(x, conv_w, centroids, bn_scale, bn_shift,
                           num_clusters=K, tile_s=128)
    out2 = jax.block_until_ready(out2)
    assert jnp.allclose(out2, ref, rtol=1e-4, atol=2e-5), (
        float(jnp.max(jnp.abs(out2 - ref))))

    # bf16 activations in HBM (halves the dominant HBM read); relaxed tolerance
    out_bf = netvlad_forward(x.astype(jnp.bfloat16), conv_w, centroids,
                             bn_scale, bn_shift, num_clusters=K)
    out_bf = jax.block_until_ready(out_bf)
    assert float(jnp.max(jnp.abs(out_bf - ref))) < 2e-2, (
        float(jnp.max(jnp.abs(out_bf - ref))))

    # non-128-multiple spatial size (S = 14*14 = 196): pad + in-kernel mask path
    x_odd = jax.random.normal(jax.random.PRNGKey(1), (N, C, 14, 14),
                              dtype=jnp.float32)
    ref_odd = netvlad_reference(x_odd, conv_w, centroids, bn_scale, bn_shift)
    out_odd = netvlad_forward(x_odd, conv_w, centroids, bn_scale, bn_shift,
                              num_clusters=K)
    out_odd = jax.block_until_ready(out_odd)
    assert jnp.allclose(out_odd, ref_odd, rtol=1e-4, atol=2e-5), (
        float(jnp.max(jnp.abs(out_odd - ref_odd))))

    print("KERNEL_OK")
</pallas_src>

<mosaic_0001>
module attributes {stable_mosaic.version = 11 : i64} {
  func.func @netvlad_kernel(%arg0: i32, %arg1: i32, %arg2: memref<2x128x256xf32, #tpu.memory_space<vmem>>, %arg3: memref<16x128xf32, #tpu.memory_space<vmem>>, %arg4: memref<8x1xf32, #tpu.memory_space<vmem>>, %arg5: memref<8x128xf32, #tpu.memory_space<vmem>>, %arg6: memref<8x128xf32, #tpu.memory_space<vmem>>, %arg7: memref<2x8x128xf32, #tpu.memory_space<vmem>>, %arg8: memref<2x8x128xf32, #tpu.memory_space<vmem>>) attributes {dimension_semantics = [#tpu.dimension_semantics<parallel>, #tpu.dimension_semantics<arbitrary>], iteration_bounds = array<i64: 1, 1>, scalar_prefetch = 0 : i64, scratch_operands = 1 : i64, tpu.core_type = #tpu.core_type<tc>, window_params = [{transform_indices = @transform_0, window_bounds = array<i64: 2, 128, 256>}, {pipeline_mode = #tpu.pipeline_mode<synchronous>, transform_indices = @transform_1, window_bounds = array<i64: 16, 128>}, {pipeline_mode = #tpu.pipeline_mode<synchronous>, transform_indices = @transform_2, window_bounds = array<i64: 8, 1>}, {pipeline_mode = #tpu.pipeline_mode<synchronous>, transform_indices = @transform_3, window_bounds = array<i64: 8, 128>}, {pipeline_mode = #tpu.pipeline_mode<synchronous>, transform_indices = @transform_4, window_bounds = array<i64: 8, 128>}, {transform_indices = @transform_5, window_bounds = array<i64: 2, 8, 128>}]} {
    %c0_i32 = arith.constant 0 : i32
    %0 = arith.cmpi eq, %arg1, %c0_i32 : i32
    %1 = arith.extui %0 : i1 to i32
    %c0_i32_0 = arith.constant 0 : i32
    %2 = arith.cmpi ne, %1, %c0_i32_0 : i32
    scf.if %2 {
      %cst_44 = arith.constant 0.000000e+00 : f32
      %119 = vector.broadcast %cst_44 : f32 to vector<2x8x128xf32>
      %c0_45 = arith.constant 0 : index
      %c0_46 = arith.constant 0 : index
      %c0_47 = arith.constant 0 : index
      %120 = vector.load %arg8[%c0_45, %c0_46, %c0_47] : memref<2x8x128xf32, #tpu.memory_space<vmem>>, vector<2x8x128xf32>
      tpu.vector_store %arg8[%c0_45, %c0_46, %c0_47], %119 {strides = array<i32>} : memref<2x8x128xf32, #tpu.memory_space<vmem>>, vector<2x8x128xf32>,
    } else {
    }
    %c0 = arith.constant 0 : index
    %c0_1 = arith.constant 0 : index
    %3 = vector.load %arg3[%c0, %c0_1] : memref<16x128xf32, #tpu.memory_space<vmem>>, vector<16x128xf32>
    %4 = vector.extract_strided_slice %3 {offsets = [8, 0], sizes = [8, 128], strides = [1, 1]} : vector<16x128xf32> to vector<8x128xf32>
    %c0_2 = arith.constant 0 : index
    %c0_3 = arith.constant 0 : index
    %5 = vector.load %arg4[%c0_2, %c0_3] : memref<8x1xf32, #tpu.memory_space<vmem>>, vector<8x1xf32>
    %c0_4 = arith.constant 0 : index
    %c0_5 = arith.constant 0 : index
    %c0_6 = arith.constant 0 : index
    %6 = vector.load %arg2[%c0_4, %c0_5, %c0_6] : memref<2x128x256xf32, #tpu.memory_space<vmem>>, vector<1x128x256xf32>
    %7 = vector.shape_cast %6 : vector<1x128x256xf32> to vector<128x256xf32>
    %8 = arith.mulf %7, %7 : vector<128x256xf32>
    %cst = arith.constant dense<0.000000e+00> : vector<256xf32>
    %9 = vector.multi_reduction <add>, %8, %cst [0] : vector<128x256xf32> to vector<256xf32>
    %10 = vector.shape_cast %9 : vector<256xf32> to vector<1x256xf32>
    %cst_7 = arith.constant 1.000000e-24 : f32
    %11 = vector.broadcast %cst_7 : f32 to vector<1x256xf32>
    %12 = arith.maximumf %10, %11 : vector<1x256xf32>
    %13 = math.rsqrt %12 : vector<1x256xf32>
    %14 = arith.mulf %13, %13 : vector<1x256xf32>
    %15 = arith.mulf %10, %14 : vector<1x256xf32>
    %cst_8 = arith.constant dense<0.000000e+00> : vector<16x256xf32>
    %16 = tpu.matmul %3, %7, %cst_8 {dimension_numbers = #tpu.dot_dimension_numbers<[1], [0], [0], [1], [0, 0, 1, 1], [], []>} : vector<16x128xf32>, vector<128x256xf32>, vector<16x256xf32> -> vector<16x256xf32>
    %17 = vector.broadcast %13 : vector<1x256xf32> to vector<16x256xf32>
    %18 = arith.mulf %16, %17 : vector<16x256xf32>
    %19 = vector.extract_strided_slice %18 {offsets = [0, 0], sizes = [8, 256], strides = [1, 1]} : vector<16x256xf32> to vector<8x256xf32>
    %20 = vector.extract_strided_slice %18 {offsets = [8, 0], sizes = [8, 256], strides = [1, 1]} : vector<16x256xf32> to vector<8x256xf32>
    %cst_9 = arith.constant dense<0xFF800000> : vector<256xf32>
    %21 = vector.multi_reduction <maximumf>, %19, %cst_9 [0] : vector<8x256xf32> to vector<256xf32>
    %22 = vector.shape_cast %21 : vector<256xf32> to vector<1x256xf32>
    %23 = vector.broadcast %22 : vector<1x256xf32> to vector<8x256xf32>
    %24 = arith.subf %19, %23 : vector<8x256xf32>
    %25 = math.exp %24 : vector<8x256xf32>
    %cst_10 = arith.constant dense<0.000000e+00> : vector<256xf32>
    %26 = vector.multi_reduction <add>, %25, %cst_10 [0] : vector<8x256xf32> to vector<256xf32>
    %27 = vector.shape_cast %26 : vector<256xf32> to vector<1x256xf32>
    %cst_11 = arith.constant 2.000000e+00 : f32
    %28 = vector.broadcast %cst_11 : f32 to vector<8x256xf32>
    %29 = arith.mulf %28, %20 : vector<8x256xf32>
    %30 = vector.broadcast %15 : vector<1x256xf32> to vector<8x256xf32>
    %31 = arith.subf %30, %29 : vector<8x256xf32>
    %32 = vector.broadcast %5 : vector<8x1xf32> to vector<8x256xf32>
    %33 = arith.addf %31, %32 : vector<8x256xf32>
    %cst_12 = arith.constant 0.000000e+00 : f32
    %34 = vector.broadcast %cst_12 : f32 to vector<8x256xf32>
    %35 = arith.maximumf %33, %34 : vector<8x256xf32>
    %36 = arith.mulf %25, %25 : vector<8x256xf32>
    %37 = arith.mulf %36, %35 : vector<8x256xf32>
    %cst_13 = arith.constant dense<0.000000e+00> : vector<256xf32>
    %38 = vector.multi_reduction <add>, %37, %cst_13 [0] : vector<8x256xf32> to vector<256xf32>
    %39 = vector.shape_cast %38 : vector<256xf32> to vector<1x256xf32>
    %cst_14 = arith.constant 9.99999996E-13 : f32
    %40 = vector.broadcast %cst_14 : f32 to vector<1x256xf32>
    %41 = arith.mulf %40, %27 : vector<1x256xf32>
    %42 = arith.mulf %41, %41 : vector<1x256xf32>
    %43 = arith.maximumf %39, %42 : vector<1x256xf32>
    %44 = math.rsqrt %43 : vector<1x256xf32>
    %45 = vector.broadcast %44 : vector<1x256xf32> to vector<8x256xf32>
    %46 = arith.mulf %25, %45 : vector<8x256xf32>
    %cst_15 = arith.constant dense<0.000000e+00> : vector<8xf32>
    %47 = vector.multi_reduction <add>, %46, %cst_15 [1] : vector<8x256xf32> to vector<8xf32>
    %48 = vector.shape_cast %47 : vector<8xf32> to vector<8x1xf32>
    %49 = vector.broadcast %13 : vector<1x256xf32> to vector<8x256xf32>
    %50 = arith.mulf %46, %49 : vector<8x256xf32>
    %cst_16 = arith.constant dense<0.000000e+00> : vector<8x128xf32>
    %51 = tpu.matmul %50, %7, %cst_16 {dimension_numbers = #tpu.dot_dimension_numbers<[1], [1], [0], [0], [0, 0, 1, 0], [], []>} : vector<8x256xf32>, vector<128x256xf32>, vector<8x128xf32> -> vector<8x128xf32>
    %c0_17 = arith.constant 0 : index
    %c0_18 = arith.constant 0 : index
    %c0_19 = arith.constant 0 : index
    %52 = vector.load %arg8[%c0_17, %c0_18, %c0_19] : memref<2x8x128xf32, #tpu.memory_space<vmem>>, vector<1x8x128xf32>
    %53 = vector.shape_cast %52 : vector<1x8x128xf32> to vector<8x128xf32>
    %54 = vector.broadcast %48 : vector<8x1xf32> to vector<8x128xf32>
    %55 = arith.mulf %4, %54 : vector<8x128xf32>
    %56 = arith.subf %51, %55 : vector<8x128xf32>
    %57 = arith.addf %53, %56 : vector<8x128xf32>
    %c0_20 = arith.constant 0 : index
    %c0_21 = arith.constant 0 : index
    %c0_22 = arith.constant 0 : index
    %58 = vector.load %arg8[%c0_20, %c0_21, %c0_22] : memref<2x8x128xf32, #tpu.memory_space<vmem>>, vector<1x8x128xf32>
    %59 = vector.shape_cast %58 : vector<1x8x128xf32> to vector<8x128xf32>
    %60 = vector.shape_cast %57 : vector<8x128xf32> to vector<1x8x128xf32>
    tpu.vector_store %arg8[%c0_20, %c0_21, %c0_22], %60 {strides = array<i32>} : memref<2x8x128xf32, #tpu.memory_space<vmem>>, vector<1x8x128xf32>,
    %c1 = arith.constant 1 : index
    %c0_23 = arith.constant 0 : index
    %c0_24 = arith.constant 0 : index
    %61 = vector.load %arg2[%c1, %c0_23, %c0_24] : memref<2x128x256xf32, #tpu.memory_space<vmem>>, vector<1x128x256xf32>
    %62 = vector.shape_cast %61 : vector<1x128x256xf32> to vector<128x256xf32>
    %63 = arith.mulf %62, %62 : vector<128x256xf32>
    %cst_25 = arith.constant dense<0.000000e+00> : vector<256xf32>
    %64 = vector.multi_reduction <add>, %63, %cst_25 [0] : vector<128x256xf32> to vector<256xf32>
    %65 = vector.shape_cast %64 : vector<256xf32> to vector<1x256xf32>
    %cst_26 = arith.constant 1.000000e-24 : f32
    %66 = vector.broadcast %cst_26 : f32 to vector<1x256xf32>
    %67 = arith.maximumf %65, %66 : vector<1x256xf32>
    %68 = math.rsqrt %67 : vector<1x256xf32>
    %69 = arith.mulf %68, %68 : vector<1x256xf32>
    %70 = arith.mulf %65, %69 : vector<1x256xf32>
    %cst_27 = arith.constant dense<0.000000e+00> : vector<16x256xf32>
    %71 = tpu.matmul %3, %62, %cst_27 {dimension_numbers = #tpu.dot_dimension_numbers<[1], [0], [0], [1], [0, 0, 1, 1], [], []>} : vector<16x128xf32>, vector<128x256xf32>, vector<16x256xf32> -> vector<16x256xf32>
    %72 = vector.broadcast %68 : vector<1x256xf32> to vector<16x256xf32>
    %73 = arith.mulf %71, %72 : vector<16x256xf32>
    %74 = vector.extract_strided_slice %73 {offsets = [0, 0], sizes = [8, 256], strides = [1, 1]} : vector<16x256xf32> to vector<8x256xf32>
    %75 = vector.extract_strided_slice %73 {offsets = [8, 0], sizes = [8, 256], strides = [1, 1]} : vector<16x256xf32> to vector<8x256xf32>
    %cst_28 = arith.constant dense<0xFF800000> : vector<256xf32>
    %76 = vector.multi_reduction <maximumf>, %74, %cst_28 [0] : vector<8x256xf32> to vector<256xf32>
    %77 = vector.shape_cast %76 : vector<256xf32> to vector<1x256xf32>
    %78 = vector.broadcast %77 : vector<1x256xf32> to vector<8x256xf32>
    %79 = arith.subf %74, %78 : vector<8x256xf32>
    %80 = math.exp %79 : vector<8x256xf32>
    %cst_29 = arith.constant dense<0.000000e+00> : vector<256xf32>
    %81 = vector.multi_reduction <add>, %80, %cst_29 [0] : vector<8x256xf32> to vector<256xf32>
    %82 = vector.shape_cast %81 : vector<256xf32> to vector<1x256xf32>
    %cst_30 = arith.constant 2.000000e+00 : f32
    %83 = vector.broadcast %cst_30 : f32 to vector<8x256xf32>
    %84 = arith.mulf %83, %75 : vector<8x256xf32>
    %85 = vector.broadcast %70 : vector<1x256xf32> to vector<8x256xf32>
    %86 = arith.subf %85, %84 : vector<8x256xf32>
    %87 = vector.broadcast %5 : vector<8x1xf32> to vector<8x256xf32>
    %88 = arith.addf %86, %87 : vector<8x256xf32>
    %cst_31 = arith.constant 0.000000e+00 : f32
    %89 = vector.broadcast %cst_31 : f32 to vector<8x256xf32>
    %90 = arith.maximumf %88, %89 : vector<8x256xf32>
    %91 = arith.mulf %80, %80 : vector<8x256xf32>
    %92 = arith.mulf %91, %90 : vector<8x256xf32>
    %cst_32 = arith.constant dense<0.000000e+00> : vector<256xf32>
    %93 = vector.multi_reduction <add>, %92, %cst_32 [0] : vector<8x256xf32> to vector<256xf32>
    %94 = vector.shape_cast %93 : vector<256xf32> to vector<1x256xf32>
    %cst_33 = arith.constant 9.99999996E-13 : f32
    %95 = vector.broadcast %cst_33 : f32 to vector<1x256xf32>
    %96 = arith.mulf %95, %82 : vector<1x256xf32>
    %97 = arith.mulf %96, %96 : vector<1x256xf32>
    %98 = arith.maximumf %94, %97 : vector<1x256xf32>
    %99 = math.rsqrt %98 : vector<1x256xf32>
    %100 = vector.broadcast %99 : vector<1x256xf32> to vector<8x256xf32>
    %101 = arith.mulf %80, %100 : vector<8x256xf32>
    %cst_34 = arith.constant dense<0.000000e+00> : vector<8xf32>
    %102 = vector.multi_reduction <add>, %101, %cst_34 [1] : vector<8x256xf32> to vector<8xf32>
    %103 = vector.shape_cast %102 : vector<8xf32> to vector<8x1xf32>
    %104 = vector.broadcast %68 : vector<1x256xf32> to vector<8x256xf32>
    %105 = arith.mulf %101, %104 : vector<8x256xf32>
    %cst_35 = arith.constant dense<0.000000e+00> : vector<8x128xf32>
    %106 = tpu.matmul %105, %62, %cst_35 {dimension_numbers = #tpu.dot_dimension_numbers<[1], [1], [0], [0], [0, 0, 1, 0], [], []>} : vector<8x256xf32>, vector<128x256xf32>, vector<8x128xf32> -> vector<8x128xf32>
    %c1_36 = arith.constant 1 : index
    %c0_37 = arith.constant 0 : index
    %c0_38 = arith.constant 0 : index
    %107 = vector.load %arg8[%c1_36, %c0_37, %c0_38] : memref<2x8x128xf32, #tpu.memory_space<vmem>>, vector<1x8x128xf32>
    %108 = vector.shape_cast %107 : vector<1x8x128xf32> to vector<8x128xf32>
    %109 = vector.broadcast %103 : vector<8x1xf32> to vector<8x128xf32>
    %110 = arith.mulf %4, %109 : vector<8x128xf32>
    %111 = arith.subf %106, %110 : vector<8x128xf32>
    %112 = arith.addf %108, %111 : vector<8x128xf32>
    %c1_39 = arith.constant 1 : index
    %c0_40 = arith.constant 0 : index
    %c0_41 = arith.constant 0 : index
    %113 = vector.load %arg8[%c1_39, %c0_40, %c0_41] : memref<2x8x128xf32, #tpu.memory_space<vmem>>, vector<1x8x128xf32>
    %114 = vector.shape_cast %113 : vector<1x8x128xf32> to vector<8x128xf32>
    %115 = vector.shape_cast %112 : vector<8x128xf32> to vector<1x8x128xf32>
    tpu.vector_store %arg8[%c1_39, %c0_40, %c0_41], %115 {strides = array<i32>} : memref<2x8x128xf32, #tpu.memory_space<vmem>>, vector<1x8x128xf32>,
    %c0_i32_42 = arith.constant 0 : i32
    %116 = arith.cmpi eq, %arg1, %c0_i32_42 : i32
    %117 = arith.extui %116 : i1 to i32
    %c0_i32_43 = arith.constant 0 : i32
    %118 = arith.cmpi ne, %117, %c0_i32_43 : i32
    scf.if %118 {
      %c0_44 = arith.constant 0 : index
      %c0_45 = arith.constant 0 : index
      %c0_46 = arith.constant 0 : index
      %119 = vector.load %arg8[%c0_44, %c0_45, %c0_46] : memref<2x8x128xf32, #tpu.memory_space<vmem>>, vector<2x8x128xf32>
      %120 = arith.mulf %119, %119 : vector<2x8x128xf32>
      %cst_47 = arith.constant dense<0.000000e+00> : vector<2x8xf32>
      %121 = vector.multi_reduction <add>, %120, %cst_47 [2] : vector<2x8x128xf32> to vector<2x8xf32>
      %122 = vector.shape_cast %121 : vector<2x8xf32> to vector<2x8x1xf32>
      %cst_48 = arith.constant 1.000000e-24 : f32
      %123 = vector.broadcast %cst_48 : f32 to vector<2x8x1xf32>
      %124 = arith.maximumf %122, %123 : vector<2x8x1xf32>
      %125 = math.rsqrt %124 : vector<2x8x1xf32>
      %126 = vector.broadcast %125 : vector<2x8x1xf32> to vector<2x8x128xf32>
      %127 = arith.mulf %119, %126 : vector<2x8x128xf32>
      %c0_49 = arith.constant 0 : index
      %c0_50 = arith.constant 0 : index
      %128 = vector.load %arg5[%c0_49, %c0_50] : memref<8x128xf32, #tpu.memory_space<vmem>>, vector<8x128xf32>
      %129 = vector.shape_cast %128 : vector<8x128xf32> to vector<1x8x128xf32>
      %130 = vector.broadcast %129 : vector<1x8x128xf32> to vector<2x8x128xf32>
      %131 = arith.mulf %127, %130 : vector<2x8x128xf32>
      %c0_51 = arith.constant 0 : index
      %c0_52 = arith.constant 0 : index
      %132 = vector.load %arg6[%c0_51, %c0_52] : memref<8x128xf32, #tpu.memory_space<vmem>>, vector<8x128xf32>
      %133 = vector.shape_cast %132 : vector<8x128xf32> to vector<1x8x128xf32>
      %134 = vector.broadcast %133 : vector<1x8x128xf32> to vector<2x8x128xf32>
      %135 = arith.addf %131, %134 : vector<2x8x128xf32>
      %136 = arith.mulf %135, %135 : vector<2x8x128xf32>
      %cst_53 = arith.constant dense<0.000000e+00> : vector<2x8xf32>
      %137 = vector.multi_reduction <add>, %136, %cst_53 [2] : vector<2x8x128xf32> to vector<2x8xf32>
      %138 = vector.shape_cast %137 : vector<2x8xf32> to vector<2x8x1xf32>
      %cst_54 = arith.constant dense<0.000000e+00> : vector<2x1xf32>
      %139 = vector.multi_reduction <add>, %138, %cst_54 [1] : vector<2x8x1xf32> to vector<2x1xf32>
      %140 = vector.shape_cast %139 : vector<2x1xf32> to vector<2x1x1xf32>
      %cst_55 = arith.constant 1.000000e-24 : f32
      %141 = vector.broadcast %cst_55 : f32 to vector<2x1x1xf32>
      %142 = arith.maximumf %140, %141 : vector<2x1x1xf32>
      %143 = math.rsqrt %142 : vector<2x1x1xf32>
      %144 = vector.broadcast %143 : vector<2x1x1xf32> to vector<2x8x128xf32>
      %145 = arith.mulf %135, %144 : vector<2x8x128xf32>
      %c0_56 = arith.constant 0 : index
      %c0_57 = arith.constant 0 : index
      %c0_58 = arith.constant 0 : index
      %146 = vector.load %arg7[%c0_56, %c0_57, %c0_58] : memref<2x8x128xf32, #tpu.memory_space<vmem>>, vector<2x8x128xf32>
      tpu.vector_store %arg7[%c0_56, %c0_57, %c0_58], %145 {strides = array<i32>} : memref<2x8x128xf32, #tpu.memory_space<vmem>>, vector<2x8x128xf32>,
    } else {
    }
    return
  }
  func.func @transform_0(%arg0: i32, %arg1: i32) -> (i32, i32, i32) {
    %c0_i32 = arith.constant 0 : i32
    %c0_i32_0 = arith.constant 0 : i32
    return %arg0, %c0_i32, %arg1 : i32, i32, i32
  }
  func.func @transform_1(%arg0: i32, %arg1: i32) -> (i32, i32) {
    %c0_i32 = arith.constant 0 : i32
    %c0_i32_0 = arith.constant 0 : i32
    %c0_i32_1 = arith.constant 0 : i32
    return %c0_i32, %c0_i32_0 : i32, i32
  }
  func.func @transform_2(%arg0: i32, %arg1: i32) -> (i32, i32) {
    %c0_i32 = arith.constant 0 : i32
    %c0_i32_0 = arith.constant 0 : i32
    %c0_i32_1 = arith.constant 0 : i32
    return %c0_i32, %c0_i32_0 : i32, i32
  }
  func.func @transform_3(%arg0: i32, %arg1: i32) -> (i32, i32) {
    %c0_i32 = arith.constant 0 : i32
    %c0_i32_0 = arith.constant 0 : i32
    %c0_i32_1 = arith.constant 0 : i32
    return %c0_i32, %c0_i32_0 : i32, i32
  }
  func.func @transform_4(%arg0: i32, %arg1: i32) -> (i32, i32) {
    %c0_i32 = arith.constant 0 : i32
    %c0_i32_0 = arith.constant 0 : i32
    %c0_i32_1 = arith.constant 0 : i32
    return %c0_i32, %c0_i32_0 : i32, i32
  }
  func.func @transform_5(%arg0: i32, %arg1: i32) -> (i32, i32, i32) {
    %c0_i32 = arith.constant 0 : i32
    %c0_i32_0 = arith.constant 0 : i32
    %c0_i32_1 = arith.constant 0 : i32
    return %arg0, %c0_i32, %c0_i32_0 : i32, i32, i32
  }
}

</mosaic_0001>

<llo_original>
// kernel: netvlad_forward.1
$region0: #{netvlad_forward.1}
  #allocation0 [shape = 'u32[]', space=smem, size = 0x4, offset = 0x4, fixed_abs, tag = 'smem constant byte address 0x4 - core index']
  #allocation1 [shape = 'u32[144,128]{1,0:T(1,128)}', space=vmem, size = 0x12000, scoped, tag = 'internal scratch']
  #allocation2 [shape = 'f32[2,8,128]{2,1,0:T(8,128)}', space=vmem, size = 0x2000, scoped, tag = 'scratch operand']
  %s0 = inlined_call_operand.vmem [shape: f32[2,128,256], index: 0, kind: input, shape index: {}]
  %s1 = inlined_call_operand.vmem [shape: f32[16,128], index: 1, kind: input, shape index: {}]
  %s2 = inlined_call_operand.vmem [shape: f32[8,1], index: 2, kind: input, shape index: {}]
  %s3 = inlined_call_operand.vmem [shape: f32[8,128], index: 3, kind: input, shape index: {}]
  %s4 = inlined_call_operand.vmem [shape: f32[8,128], index: 4, kind: input, shape index: {}]
  %s5 = inlined_call_operand.vmem [shape: f32[2,8,128], index: 5, kind: output, shape index: {}]
  %s6 = sld [smem:[#allocation0]]
  $region38: #{netvlad_forward.1} parent=0
    _
  %s8 = ssub.s32 1, %s6
  %s9 = scalar_select 0, %s8, %s6
  // Predicated region
  $region2: #{netvlad_forward.1} parent=0 // pred_check
    _
  $region3: #{netvlad_forward.1} parent=0 // pred_check_branch
    %11 = sbr.rel (0) target = $region5
  $region4: #{netvlad_forward.1} parent=0 // pred_region
    _
  $region5: #{netvlad_forward.1} parent=0 // pred_fallthru
    _
  // Predicated region
  $region6: #{netvlad_forward.1} parent=0 // pred_check
    _
  $region7: #{netvlad_forward.1} parent=0 // pred_check_branch
    %13 = sbr.rel (0) target = $region9
  $region8: #{netvlad_forward.1} parent=0 // pred_region
    _
  $region9: #{netvlad_forward.1} parent=0 // pred_fallthru
    _
  // Predicated region
  $region10: #{netvlad_forward.1} parent=0 // pred_check
    _
  $region11: #{netvlad_forward.1} parent=0 // pred_check_branch
    %15 = sbr.rel (0) target = $region13
  $region12: #{netvlad_forward.1} parent=0 // pred_region
    _
  $region13: #{netvlad_forward.1} parent=0 // pred_fallthru
    _
  // Predicated region
  $region14: #{netvlad_forward.1} parent=0 // pred_check
    _
  $region15: #{netvlad_forward.1} parent=0 // pred_check_branch
    %17 = sbr.rel (0) target = $region17
  $region16: #{netvlad_forward.1} parent=0 // pred_region
    _
  $region17: #{netvlad_forward.1} parent=0 // pred_fallthru
    _
  // Predicated region
  $region18: #{netvlad_forward.1} parent=0 // pred_check
    _
  $region19: #{netvlad_forward.1} parent=0 // pred_check_branch
    %19 = sbr.rel (0) target = $region21
  $region20: #{netvlad_forward.1} parent=0 // pred_region
    _
  $region21: #{netvlad_forward.1} parent=0 // pred_fallthru
    _
  %p20 = scmp.eq.s32.totalorder 0, 0
  // Predicated region
  $region22: #{netvlad_forward.1} parent=0 // pred_check
    %p21 = pneg %p20
  $region23: #{netvlad_forward.1} parent=0 // pred_check_branch
    %23 = sbr.rel (%p21) target = $region25
  $region24: #{netvlad_forward.1} parent=0 // pred_region
    %24 = vst [vmem:[#allocation2] sm:$0xff] 0.0
    %25 = vst [vmem:[#allocation2 + $0x8] sm:$0xff] 0.0
  $region25: #{netvlad_forward.1} parent=0 // pred_fallthru
    _
  %v26 = vld [vmem:[%s1] sm:$0xff]
  %v27 = vld [vmem:[%s1 + $0x8] sm:$0xff]
  %v28 = vld [vmem:[%s2] sm:$0xff]
  %v29 = vld [vmem:[%s0] sm:$0xff]
  %v30 = vld [vmem:[%s0 + $0x8] sm:$0xff]
  %v31 = vld [vmem:[%s0 + $0x10] sm:$0xff]
  %v32 = vld [vmem:[%s0 + $0x18] sm:$0xff]
  %v33 = vld [vmem:[%s0 + $0x20] sm:$0xff]
  %v34 = vld [vmem:[%s0 + $0x28] sm:$0xff]
  %v35 = vld [vmem:[%s0 + $0x30] sm:$0xff]
  %v36 = vld [vmem:[%s0 + $0x38] sm:$0xff]
  %v37 = vld [vmem:[%s0 + $0x40] sm:$0xff]
  %v38 = vld [vmem:[%s0 + $0x48] sm:$0xff]
  %v39 = vld [vmem:[%s0 + $0x50] sm:$0xff]
  %v40 = vld [vmem:[%s0 + $0x58] sm:$0xff]
  %v41 = vld [vmem:[%s0 + $0x60] sm:$0xff]
  %v42 = vld [vmem:[%s0 + $0x68] sm:$0xff]
  %v43 = vld [vmem:[%s0 + $0x70] sm:$0xff]
  %v44 = vld [vmem:[%s0 + $0x78] sm:$0xff]
  %v45 = vld [vmem:[%s0 + $0x80] sm:$0xff]
  %v46 = vld [vmem:[%s0 + $0x88] sm:$0xff]
  %v47 = vld [vmem:[%s0 + $0x90] sm:$0xff]
  %v48 = vld [vmem:[%s0 + $0x98] sm:$0xff]
  %v49 = vld [vmem:[%s0 + $0xa0] sm:$0xff]
  %v50 = vld [vmem:[%s0 + $0xa8] sm:$0xff]
  %v51 = vld [vmem:[%s0 + $0xb0] sm:$0xff]
  %v52 = vld [vmem:[%s0 + $0xb8] sm:$0xff]
  %v53 = vld [vmem:[%s0 + $0xc0] sm:$0xff]
  %v54 = vld [vmem:[%s0 + $0xc8] sm:$0xff]
  %v55 = vld [vmem:[%s0 + $0xd0] sm:$0xff]
  %v56 = vld [vmem:[%s0 + $0xd8] sm:$0xff]
  %v57 = vld [vmem:[%s0 + $0xe0] sm:$0xff]
  %v58 = vld [vmem:[%s0 + $0xe8] sm:$0xff]
  %v59 = vld [vmem:[%s0 + $0xf0] sm:$0xff]
  %v60 = vld [vmem:[%s0 + $0xf8] sm:$0xff]
  %v61 = vmul.f32 %v29, %v29
  %v62 = vmul.f32 %v30, %v30
  %v63 = vmul.f32 %v31, %v31
  %v64 = vmul.f32 %v32, %v32
  %v65 = vmul.f32 %v33, %v33
  %v66 = vmul.f32 %v34, %v34
  %v67 = vmul.f32 %v35, %v35
  %v68 = vmul.f32 %v36, %v36
  %v69 = vmul.f32 %v37, %v37
  %v70 = vmul.f32 %v38, %v38
  %v71 = vmul.f32 %v39, %v39
  %v72 = vmul.f32 %v40, %v40
  %v73 = vmul.f32 %v41, %v41
  %v74 = vmul.f32 %v42, %v42
  %v75 = vmul.f32 %v43, %v43
  %v76 = vmul.f32 %v44, %v44
  %v77 = vmul.f32 %v45, %v45
  %v78 = vmul.f32 %v46, %v46
  %v79 = vmul.f32 %v47, %v47
  %v80 = vmul.f32 %v48, %v48
  %v81 = vmul.f32 %v49, %v49
  %v82 = vmul.f32 %v50, %v50
  %v83 = vmul.f32 %v51, %v51
  %v84 = vmul.f32 %v52, %v52
  %v85 = vmul.f32 %v53, %v53
  %v86 = vmul.f32 %v54, %v54
  %v87 = vmul.f32 %v55, %v55
  %v88 = vmul.f32 %v56, %v56
  %v89 = vmul.f32 %v57, %v57
  %v90 = vmul.f32 %v58, %v58
  %v91 = vmul.f32 %v59, %v59
  %v92 = vmul.f32 %v60, %v60
  %v93 = vadd.f32 %v61, %v63
  %v94 = vadd.f32 %v93, %v65
  %v95 = vadd.f32 %v94, %v67
  %v96 = vadd.f32 %v95, %v69
  %v97 = vadd.f32 %v96, %v71
  %v98 = vadd.f32 %v97, %v73
  %v99 = vadd.f32 %v98, %v75
  %v100 = vadd.f32 %v99, %v77
  %v101 = vadd.f32 %v100, %v79
  %v102 = vadd.f32 %v101, %v81
  %v103 = vadd.f32 %v102, %v83
  %v104 = vadd.f32 %v103, %v85
  %v105 = vadd.f32 %v104, %v87
  %v106 = vadd.f32 %v105, %v89
  %v107 = vadd.f32 %v106, %v91
  %v108 = vrot.slane %v107, 4
  %v109 = vadd.f32 %v107, %v108
  %v110 = vrot.slane %v109, 2
  %v111 = vadd.f32 %v109, %v110
  %v112 = vrot.slane %v111, 1
  %v113 = vadd.f32 %v111, %v112
  %v114 = vadd.f32 %v62, %v64
  %v115 = vadd.f32 %v114, %v66
  %v116 = vadd.f32 %v115, %v68
  %v117 = vadd.f32 %v116, %v70
  %v118 = vadd.f32 %v117, %v72
  %v119 = vadd.f32 %v118, %v74
  %v120 = vadd.f32 %v119, %v76
  %v121 = vadd.f32 %v120, %v78
  %v122 = vadd.f32 %v121, %v80
  %v123 = vadd.f32 %v122, %v82
  %v124 = vadd.f32 %v123, %v84
  %v125 = vadd.f32 %v124, %v86
  %v126 = vadd.f32 %v125, %v88
  %v127 = vadd.f32 %v126, %v90
  %v128 = vadd.f32 %v127, %v92
  %v129 = vrot.slane %v128, 4
  %v130 = vadd.f32 %v128, %v129
  %v131 = vrot.slane %v130, 2
  %v132 = vadd.f32 %v130, %v131
  %v133 = vrot.slane %v132, 1
  %v134 = vadd.f32 %v132, %v133
  %v135 = vmax.f32 %v113, 1e-24
  %v136 = vmax.f32 %v134, 1e-24
  %v137 = vrsqrt.pop %v135
  %v138 = vrsqrt.pop %v136
  %v139 = vmul.f32 %v137, %v137
  %v140 = vmul.f32 %v138, %v138
  %v141 = vmul.f32 %v113, %v139
  %v142 = vmul.f32 %v134, %v140
  %143 = vmatprep.subr.mxu0 %v60
  %144 = vmatpush1.msra.mxu0 %v59
  %145 = vmatprep.subr.mxu0 %v58
  %146 = vmatpush1.msra.mxu0 %v57
  %147 = vmatprep.subr.mxu0 %v56
  %148 = vmatpush1.msra.mxu0 %v55
  %149 = vmatprep.subr.mxu0 %v54
  %150 = vmatpush1.msra.mxu0 %v53
  %151 = vmatprep.subr.mxu0 %v52
  %152 = vmatpush1.msra.mxu0 %v51
  %153 = vmatprep.subr.mxu0 %v50
  %154 = vmatpush1.msra.mxu0 %v49
  %155 = vmatprep.subr.mxu0 %v48
  %156 = vmatpush1.msra.mxu0 %v47
  %157 = vmatprep.subr.mxu0 %v46
  %158 = vmatpush1.msra.mxu0 %v45
  %159 = vmatprep.subr.mxu0 %v44
  %160 = vmatpush1.msra.mxu0 %v43
  %161 = vmatprep.subr.mxu0 %v42
  %162 = vmatpush1.msra.mxu0 %v41
  %163 = vmatprep.subr.mxu0 %v40
  %164 = vmatpush1.msra.mxu0 %v39
  %165 = vmatprep.subr.mxu0 %v38
  %166 = vmatpush1.msra.mxu0 %v37
  %167 = vmatprep.subr.mxu0 %v36
  %168 = vmatpush1.msra.mxu0 %v35
  %169 = vmatprep.subr.mxu0 %v34
  %170 = vmatpush1.msra.mxu0 %v33
  %171 = vmatprep.subr.mxu0 %v32
  %172 = vmatpush1.msra.mxu0 %v31
  %173 = vmatprep.subr.mxu0 %v30
  %174 = vmatpush1.msra.mxu0 %v29
  %175 = vmatprep.subr.mxu0 0.0
  %176 = vmatpush2.msra.mxu0 0.0
  %177 = vmatprep.subr.mxu0 0.0
  %178 = vmatpush2.msra.mxu0 0.0
  %179 = vmatprep.subr.mxu0 0.0
  %180 = vmatpush2.msra.mxu0 0.0
  %181 = vmatprep.subr.mxu0 0.0
  %182 = vmatpush2.msra.mxu0 0.0
  %183 = vmatprep.subr.mxu0 0.0
  %184 = vmatpush2.msra.mxu0 0.0
  %185 = vmatprep.subr.mxu0 0.0
  %186 = vmatpush2.msra.mxu0 0.0
  %187 = vmatprep.subr.mxu0 0.0
  %188 = vmatpush2.msra.mxu0 0.0
  %189 = vmatprep.subr.mxu0 0.0
  %190 = vmatpush2.msra.mxu0 0.0
  %191 = vmatprep.subr.mxu0 0.0
  %192 = vmatpush2.msra.mxu0 0.0
  %193 = vmatprep.subr.mxu0 0.0
  %194 = vmatpush2.msra.mxu0 0.0
  %195 = vmatprep.subr.mxu0 0.0
  %196 = vmatpush2.msra.mxu0 0.0
  %197 = vmatprep.subr.mxu0 0.0
  %198 = vmatpush2.msra.mxu0 0.0
  %199 = vmatprep.subr.mxu0 0.0
  %200 = vmatpush2.msra.mxu0 0.0
  %201 = vmatprep.subr.mxu0 0.0
  %202 = vmatpush2.msra.mxu0 0.0
  %203 = vmatprep.subr.mxu0 0.0
  %204 = vmatpush2.msra.mxu0 0.0
  %205 = vmatprep.subr.mxu0 0.0
  %206 = vmatpush2.msra.mxu0 0.0
  %207 = vmatprep.mubr.f32.mxu0 0.0
  %208 = vmatmul.mubr.f32.gmra.mxu0 %v26
  %v209 = vpop.f32.mrf.mxu0
  %v210 = vadd.f32 0.0, %v209
  %v211 = vpop.f32.mrf.mxu0
  %v212 = vadd.f32 0.0, %v211
  %213 = vmatprep.mubr.f32.mxu0 0.0
  %214 = vmatmul.mubr.f32.gmra.mxu0 %v27
  %v215 = vpop.f32.mrf.mxu0
  %v216 = vadd.f32 0.0, %v215
  %v217 = vpop.f32.mrf.mxu0
  %v218 = vadd.f32 0.0, %v217
  %219 = vdwg.mxu0
  %v220 = vmul.f32 %v210, %v137
  %v221 = vmul.f32 %v212, %v138
  %v222 = vmul.f32 %v216, %v137
  %v223 = vmul.f32 %v218, %v138
  %v224 = vrot.slane %v220, 4
  %v225 = vmax.f32 %v220, %v224
  %v226 = vrot.slane %v225, 2
  %v227 = vmax.f32 %v225, %v226
  %v228 = vrot.slane %v227, 1
  %v229 = vmax.f32 %v227, %v228
  %v230 = vrot.slane %v221, 4
  %v231 = vmax.f32 %v221, %v230
  %v232 = vrot.slane %v231, 2
  %v233 = vmax.f32 %v231, %v232
  %v234 = vrot.slane %v233, 1
  %v235 = vmax.f32 %v233, %v234
  %v236 = vsub.f32 %v220, %v229
  %v237 = vsub.f32 %v221, %v235
  %v238 = vmul.f32 %v236, 1.442695
  %v239 = vpow.pop %v238
  %v240 = vmul.f32 %v237, 1.442695
  %v241 = vpow.pop %v240
  %v242 = vrot.slane %v239, 4
  %v243 = vadd.f32 %v239, %v242
  %v244 = vrot.slane %v243, 2
  %v245 = vadd.f32 %v243, %v244
  %v246 = vrot.slane %v245, 1
  %v247 = vadd.f32 %v245, %v246
  %v248 = vrot.slane %v241, 4
  %v249 = vadd.f32 %v241, %v248
  %v250 = vrot.slane %v249, 2
  %v251 = vadd.f32 %v249, %v250
  %v252 = vrot.slane %v251, 1
  %v253 = vadd.f32 %v251, %v252
  %v254 = vmul.f32 %v222, 2.0
  %v255 = vmul.f32 %v223, 2.0
  %v256 = vsub.f32 %v141, %v254
  %v257 = vsub.f32 %v142, %v255
  %259 = vset.pattern.permute.xlu0 0
  %260 = vperm.xlu0 %259, %v28
  %v261 = vpop.permute.xlu0 %260
  %v263 = vadd.f32 %v256, %v261
  %v264 = vadd.f32 %v257, %v261
  %v265 = vmax.f32 %v263, 0.0
  %v266 = vmax.f32 %v264, 0.0
  %v267 = vmul.f32 %v239, %v239
  %v268 = vmul.f32 %v241, %v241
  %v269 = vmul.f32 %v267, %v265
  %v270 = vmul.f32 %v268, %v266
  %v271 = vrot.slane %v269, 4
  %v272 = vadd.f32 %v269, %v271
  %v273 = vrot.slane %v272, 2
  %v274 = vadd.f32 %v272, %v273
  %v275 = vrot.slane %v274, 1
  %v276 = vadd.f32 %v274, %v275
  %v277 = vrot.slane %v270, 4
  %v278 = vadd.f32 %v270, %v277
  %v279 = vrot.slane %v278, 2
  %v280 = vadd.f32 %v278, %v279
  %v281 = vrot.slane %v280, 1
  %v282 = vadd.f32 %v280, %v281
  %v283 = vmul.f32 %v247, 1e-12
  %v284 = vmul.f32 %v253, 1e-12
  %v285 = vmul.f32 %v283, %v283
  %v286 = vmul.f32 %v284, %v284
  %v287 = vmax.f32 %v276, %v285
  %v288 = vmax.f32 %v282, %v286
  %v289 = vrsqrt.pop %v287
  %v290 = vrsqrt.pop %v288
  %v291 = vmul.f32 %v239, %v289
  %v292 = vmul.f32 %v241, %v290
  %v293 = vadd.f32 %v291, %v292
  %294 = vadd.xlane.f32.xlu0 %v293
  %v295 = vpop.xlane.xlu0 %294
  %v296 = vmul.f32 %v291, %v137
  %v297 = vmul.f32 %v292, %v138
  %298 = vmatprep.subr.mxu0 %v60
  %299 = vmatpush1.xpose.msra.mxu0 %v59
  %300 = vmatprep.subr.mxu0 %v58
  %301 = vmatpush1.xpose.msra.mxu0 %v57
  %302 = vmatprep.subr.mxu0 %v56
  %303 = vmatpush1.xpose.msra.mxu0 %v55
  %304 = vmatprep.subr.mxu0 %v54
  %305 = vmatpush1.xpose.msra.mxu0 %v53
  %306 = vmatprep.subr.mxu0 %v52
  %307 = vmatpush1.xpose.msra.mxu0 %v51
  %308 = vmatprep.subr.mxu0 %v50
  %309 = vmatpush1.xpose.msra.mxu0 %v49
  %310 = vmatprep.subr.mxu0 %v48
  %311 = vmatpush1.xpose.msra.mxu0 %v47
  %312 = vmatprep.subr.mxu0 %v46
  %313 = vmatpush1.xpose.msra.mxu0 %v45
  %314 = vmatprep.subr.mxu0 %v44
  %315 = vmatpush1.xpose.msra.mxu0 %v43
  %316 = vmatprep.subr.mxu0 %v42
  %317 = vmatpush1.xpose.msra.mxu0 %v41
  %318 = vmatprep.subr.mxu0 %v40
  %319 = vmatpush1.xpose.msra.mxu0 %v39
  %320 = vmatprep.subr.mxu0 %v38
  %321 = vmatpush1.xpose.msra.mxu0 %v37
  %322 = vmatprep.subr.mxu0 %v36
  %323 = vmatpush1.xpose.msra.mxu0 %v35
  %324 = vmatprep.subr.mxu0 %v34
  %325 = vmatpush1.xpose.msra.mxu0 %v33
  %326 = vmatprep.subr.mxu0 %v32
  %327 = vmatpush1.xpose.msra.mxu0 %v31
  %328 = vmatprep.subr.mxu0 %v30
  %329 = vmatpush1.xpose.msra.mxu0 %v29
  %330 = vmatprep.subr.mxu0 0.0
  %331 = vmatpush2.xpose.msra.mxu0 0.0
  %332 = vmatprep.subr.mxu0 0.0
  %333 = vmatpush2.xpose.msra.mxu0 0.0
  %334 = vmatprep.subr.mxu0 0.0
  %335 = vmatpush2.xpose.msra.mxu0 0.0
  %336 = vmatprep.subr.mxu0 0.0
  %337 = vmatpush2.xpose.msra.mxu0 0.0
  %338 = vmatprep.subr.mxu0 0.0
  %339 = vmatpush2.xpose.msra.mxu0 0.0
  %340 = vmatprep.subr.mxu0 0.0
  %341 = vmatpush2.xpose.msra.mxu0 0.0
  %342 = vmatprep.subr.mxu0 0.0
  %343 = vmatpush2.xpose.msra.mxu0 0.0
  %344 = vmatprep.subr.mxu0 0.0
  %345 = vmatpush2.xpose.msra.mxu0 0.0
  %346 = vmatprep.subr.mxu0 0.0
  %347 = vmatpush2.xpose.msra.mxu0 0.0
  %348 = vmatprep.subr.mxu0 0.0
  %349 = vmatpush2.xpose.msra.mxu0 0.0
  %350 = vmatprep.subr.mxu0 0.0
  %351 = vmatpush2.xpose.msra.mxu0 0.0
  %352 = vmatprep.subr.mxu0 0.0
  %353 = vmatpush2.xpose.msra.mxu0 0.0
  %354 = vmatprep.subr.mxu0 0.0
  %355 = vmatpush2.xpose.msra.mxu0 0.0
  %356 = vmatprep.subr.mxu0 0.0
  %357 = vmatpush2.xpose.msra.mxu0 0.0
  %358 = vmatprep.subr.mxu0 0.0
  %359 = vmatpush2.xpose.msra.mxu0 0.0
  %360 = vmatprep.subr.mxu0 0.0
  %361 = vmatpush2.xpose.msra.mxu0 0.0
  %362 = vmatprep.mubr.f32.mxu0 %v297
  %363 = vmatmul.mubr.f32.gmra.mxu0 %v296
  %v364 = vpop.f32.mrf.mxu0
  %v365 = vadd.f32 0.0, %v364
  %v366 = vpop.f32.mrf.mxu0
  %367 = vdwg.mxu0
  %v368 = vld [vmem:[#allocation2] sm:$0xff]
  %v369 = vmul.f32 %v27, %v295
  %v370 = vsub.f32 %v365, %v369
  %v371 = vadd.f32 %v368, %v370
  %372 = vst [vmem:[#allocation2] sm:$0xff] %v371
  %s373 = scalar_lea.vmem %s0, 256
  %v374 = vld [vmem:[%s373] sm:$0xff]
  %v375 = vld [vmem:[%s373 + $0x8] sm:$0xff]
  %v376 = vld [vmem:[%s373 + $0x10] sm:$0xff]
  %v377 = vld [vmem:[%s373 + $0x18] sm:$0xff]
  %v378 = vld [vmem:[%s373 + $0x20] sm:$0xff]
  %v379 = vld [vmem:[%s373 + $0x28] sm:$0xff]
  %v380 = vld [vmem:[%s373 + $0x30] sm:$0xff]
  %v381 = vld [vmem:[%s373 + $0x38] sm:$0xff]
  %v382 = vld [vmem:[%s373 + $0x40] sm:$0xff]
  %v383 = vld [vmem:[%s373 + $0x48] sm:$0xff]
  %v384 = vld [vmem:[%s373 + $0x50] sm:$0xff]
  %v385 = vld [vmem:[%s373 + $0x58] sm:$0xff]
  %v386 = vld [vmem:[%s373 + $0x60] sm:$0xff]
  %v387 = vld [vmem:[%s373 + $0x68] sm:$0xff]
  %v388 = vld [vmem:[%s373 + $0x70] sm:$0xff]
  %v389 = vld [vmem:[%s373 + $0x78] sm:$0xff]
  %v390 = vld [vmem:[%s373 + $0x80] sm:$0xff]
  %v391 = vld [vmem:[%s373 + $0x88] sm:$0xff]
  %v392 = vld [vmem:[%s373 + $0x90] sm:$0xff]
  %v393 = vld [vmem:[%s373 + $0x98] sm:$0xff]
  %v394 = vld [vmem:[%s373 + $0xa0] sm:$0xff]
  %v395 = vld [vmem:[%s373 + $0xa8] sm:$0xff]
  %v396 = vld [vmem:[%s373 + $0xb0] sm:$0xff]
  %v397 = vld [vmem:[%s373 + $0xb8] sm:$0xff]
  %v398 = vld [vmem:[%s373 + $0xc0] sm:$0xff]
  %v399 = vld [vmem:[%s373 + $0xc8] sm:$0xff]
  %v400 = vld [vmem:[%s373 + $0xd0] sm:$0xff]
  %v401 = vld [vmem:[%s373 + $0xd8] sm:$0xff]
  %v402 = vld [vmem:[%s373 + $0xe0] sm:$0xff]
  %v403 = vld [vmem:[%s373 + $0xe8] sm:$0xff]
  %v404 = vld [vmem:[%s373 + $0xf0] sm:$0xff]
  %v405 = vld [vmem:[%s373 + $0xf8] sm:$0xff]
  %v406 = vmul.f32 %v374, %v374
  %v407 = vmul.f32 %v375, %v375
  %v408 = vmul.f32 %v376, %v376
  %v409 = vmul.f32 %v377, %v377
  %v410 = vmul.f32 %v378, %v378
  %v411 = vmul.f32 %v379, %v379
  %v412 = vmul.f32 %v380, %v380
  %v413 = vmul.f32 %v381, %v381
  %v414 = vmul.f32 %v382, %v382
  %v415 = vmul.f32 %v383, %v383
  %v416 = vmul.f32 %v384, %v384
  %v417 = vmul.f32 %v385, %v385
  %v418 = vmul.f32 %v386, %v386
  %v419 = vmul.f32 %v387, %v387
  %v420 = vmul.f32 %v388, %v388
  %v421 = vmul.f32 %v389, %v389
  %v422 = vmul.f32 %v390, %v390
  %v423 = vmul.f32 %v391, %v391
  %v424 = vmul.f32 %v392, %v392
  %v425 = vmul.f32 %v393, %v393
  %v426 = vmul.f32 %v394, %v394
  %v427 = vmul.f32 %v395, %v395
  %v428 = vmul.f32 %v396, %v396
  %v429 = vmul.f32 %v397, %v397
  %v430 = vmul.f32 %v398, %v398
  %v431 = vmul.f32 %v399, %v399
  %v432 = vmul.f32 %v400, %v400
  %v433 = vmul.f32 %v401, %v401
  %v434 = vmul.f32 %v402, %v402
  %v435 = vmul.f32 %v403, %v403
  %v436 = vmul.f32 %v404, %v404
  %v437 = vmul.f32 %v405, %v405
  %v438 = vadd.f32 %v406, %v408
  %v439 = vadd.f32 %v438, %v410
  %v440 = vadd.f32 %v439, %v412
  %v441 = vadd.f32 %v440, %v414
  %v442 = vadd.f32 %v441, %v416
  %v443 = vadd.f32 %v442, %v418
  %v444 = vadd.f32 %v443, %v420
  %v445 = vadd.f32 %v444, %v422
  %v446 = vadd.f32 %v445, %v424
  %v447 = vadd.f32 %v446, %v426
  %v448 = vadd.f32 %v447, %v428
  %v449 = vadd.f32 %v448, %v430
  %v450 = vadd.f32 %v449, %v432
  %v451 = vadd.f32 %v450, %v434
  %v452 = vadd.f32 %v451, %v436
  %v453 = vrot.slane %v452, 4
  %v454 = vadd.f32 %v452, %v453
  %v455 = vrot.slane %v454, 2
  %v456 = vadd.f32 %v454, %v455
  %v457 = vrot.slane %v456, 1
  %v458 = vadd.f32 %v456, %v457
  %v459 = vadd.f32 %v407, %v409
  %v460 = vadd.f32 %v459, %v411
  %v461 = vadd.f32 %v460, %v413
  %v462 = vadd.f32 %v461, %v415
  %v463 = vadd.f32 %v462, %v417
  %v464 = vadd.f32 %v463, %v419
  %v465 = vadd.f32 %v464, %v421
  %v466 = vadd.f32 %v465, %v423
  %v467 = vadd.f32 %v466, %v425
  %v468 = vadd.f32 %v467, %v427
  %v469 = vadd.f32 %v468, %v429
  %v470 = vadd.f32 %v469, %v431
  %v471 = vadd.f32 %v470, %v433
  %v472 = vadd.f32 %v471, %v435
  %v473 = vadd.f32 %v472, %v437
  %v474 = vrot.slane %v473, 4
  %v475 = vadd.f32 %v473, %v474
  %v476 = vrot.slane %v475, 2
  %v477 = vadd.f32 %v475, %v476
  %v478 = vrot.slane %v477, 1
  %v479 = vadd.f32 %v477, %v478
  %v480 = vmax.f32 %v458, 1e-24
  %v481 = vmax.f32 %v479, 1e-24
  %v482 = vrsqrt.pop %v480
  %v483 = vrsqrt.pop %v481
  %v484 = vmul.f32 %v482, %v482
  %v485 = vmul.f32 %v483, %v483
  %v486 = vmul.f32 %v458, %v484
  %v487 = vmul.f32 %v479, %v485
  %488 = vmatprep.subr.mxu0 %v405
  %489 = vmatpush1.msra.mxu0 %v404
  %490 = vmatprep.subr.mxu0 %v403
  %491 = vmatpush1.msra.mxu0 %v402
  %492 = vmatprep.subr.mxu0 %v401
  %493 = vmatpush1.msra.mxu0 %v400
  %494 = vmatprep.subr.mxu0 %v399
  %495 = vmatpush1.msra.mxu0 %v398
  %496 = vmatprep.subr.mxu0 %v397
  %497 = vmatpush1.msra.mxu0 %v396
  %498 = vmatprep.subr.mxu0 %v395
  %499 = vmatpush1.msra.mxu0 %v394
  %500 = vmatprep.subr.mxu0 %v393
  %501 = vmatpush1.msra.mxu0 %v392
  %502 = vmatprep.subr.mxu0 %v391
  %503 = vmatpush1.msra.mxu0 %v390
  %504 = vmatprep.subr.mxu0 %v389
  %505 = vmatpush1.msra.mxu0 %v388
  %506 = vmatprep.subr.mxu0 %v387
  %507 = vmatpush1.msra.mxu0 %v386
  %508 = vmatprep.subr.mxu0 %v385
  %509 = vmatpush1.msra.mxu0 %v384
  %510 = vmatprep.subr.mxu0 %v383
  %511 = vmatpush1.msra.mxu0 %v382
  %512 = vmatprep.subr.mxu0 %v381
  %513 = vmatpush1.msra.mxu0 %v380
  %514 = vmatprep.subr.mxu0 %v379
  %515 = vmatpush1.msra.mxu0 %v378
  %516 = vmatprep.subr.mxu0 %v377
  %517 = vmatpush1.msra.mxu0 %v376
  %518 = vmatprep.subr.mxu0 %v375
  %519 = vmatpush1.msra.mxu0 %v374
  %520 = vmatprep.subr.mxu0 0.0
  %521 = vmatpush2.msra.mxu0 0.0
  %522 = vmatprep.subr.mxu0 0.0
  %523 = vmatpush2.msra.mxu0 0.0
  %524 = vmatprep.subr.mxu0 0.0
  %525 = vmatpush2.msra.mxu0 0.0
  %526 = vmatprep.subr.mxu0 0.0
  %527 = vmatpush2.msra.mxu0 0.0
  %528 = vmatprep.subr.mxu0 0.0
  %529 = vmatpush2.msra.mxu0 0.0
  %530 = vmatprep.subr.mxu0 0.0
  %531 = vmatpush2.msra.mxu0 0.0
  %532 = vmatprep.subr.mxu0 0.0
  %533 = vmatpush2.msra.mxu0 0.0
  %534 = vmatprep.subr.mxu0 0.0
  %535 = vmatpush2.msra.mxu0 0.0
  %536 = vmatprep.subr.mxu0 0.0
  %537 = vmatpush2.msra.mxu0 0.0
  %538 = vmatprep.subr.mxu0 0.0
  %539 = vmatpush2.msra.mxu0 0.0
  %540 = vmatprep.subr.mxu0 0.0
  %541 = vmatpush2.msra.mxu0 0.0
  %542 = vmatprep.subr.mxu0 0.0
  %543 = vmatpush2.msra.mxu0 0.0
  %544 = vmatprep.subr.mxu0 0.0
  %545 = vmatpush2.msra.mxu0 0.0
  %546 = vmatprep.subr.mxu0 0.0
  %547 = vmatpush2.msra.mxu0 0.0
  %548 = vmatprep.subr.mxu0 0.0
  %549 = vmatpush2.msra.mxu0 0.0
  %550 = vmatprep.subr.mxu0 0.0
  %551 = vmatpush2.msra.mxu0 0.0
  %552 = vmatprep.mubr.f32.mxu0 0.0
  %553 = vmatmul.mubr.f32.gmra.mxu0 %v26
  %v554 = vpop.f32.mrf.mxu0
  %v555 = vadd.f32 0.0, %v554
  %v556 = vpop.f32.mrf.mxu0
  %v557 = vadd.f32 0.0, %v556
  %558 = vmatprep.mubr.f32.mxu0 0.0
  %559 = vmatmul.mubr.f32.gmra.mxu0 %v27
  %v560 = vpop.f32.mrf.mxu0
  %v561 = vadd.f32 0.0, %v560
  %v562 = vpop.f32.mrf.mxu0
  %v563 = vadd.f32 0.0, %v562
  %564 = vdwg.mxu0
  %v565 = vmul.f32 %v555, %v482
  %v566 = vmul.f32 %v557, %v483
  %v567 = vmul.f32 %v561, %v482
  %v568 = vmul.f32 %v563, %v483
  %v569 = vrot.slane %v565, 4
  %v570 = vmax.f32 %v565, %v569
  %v571 = vrot.slane %v570, 2
  %v572 = vmax.f32 %v570, %v571
  %v573 = vrot.slane %v572, 1
  %v574 = vmax.f32 %v572, %v573
  %v575 = vrot.slane %v566, 4
  %v576 = vmax.f32 %v566, %v575
  %v577 = vrot.slane %v576, 2
  %v578 = vmax.f32 %v576, %v577
  %v579 = vrot.slane %v578, 1
  %v580 = vmax.f32 %v578, %v579
  %v581 = vsub.f32 %v565, %v574
  %v582 = vsub.f32 %v566, %v580
  %v583 = vmul.f32 %v581, 1.442695
  %v584 = vpow.pop %v583
  %v585 = vmul.f32 %v582, 1.442695
  %v586 = vpow.pop %v585
  %v587 = vrot.slane %v584, 4
  %v588 = vadd.f32 %v584, %v587
  %v589 = vrot.slane %v588, 2
  %v590 = vadd.f32 %v588, %v589
  %v591 = vrot.slane %v590, 1
  %v592 = vadd.f32 %v590, %v591
  %v593 = vrot.slane %v586, 4
  %v594 = vadd.f32 %v586, %v593
  %v595 = vrot.slane %v594, 2
  %v596 = vadd.f32 %v594, %v595
  %v597 = vrot.slane %v596, 1
  %v598 = vadd.f32 %v596, %v597
  %v599 = vmul.f32 %v567, 2.0
  %v600 = vmul.f32 %v568, 2.0
  %v601 = vsub.f32 %v486, %v599
  %v602 = vsub.f32 %v487, %v600
  %v603 = vadd.f32 %v601, %v261
  %v604 = vadd.f32 %v602, %v261
  %v605 = vmax.f32 %v603, 0.0
  %v606 = vmax.f32 %v604, 0.0
  %v607 = vmul.f32 %v584, %v584
  %v608 = vmul.f32 %v586, %v586
  %v609 = vmul.f32 %v607, %v605
  %v610 = vmul.f32 %v608, %v606
  %v611 = vrot.slane %v609, 4
  %v612 = vadd.f32 %v609, %v611
  %v613 = vrot.slane %v612, 2
  %v614 = vadd.f32 %v612, %v613
  %v615 = vrot.slane %v614, 1
  %v616 = vadd.f32 %v614, %v615
  %v617 = vrot.slane %v610, 4
  %v618 = vadd.f32 %v610, %v617
  %v619 = vrot.slane %v618, 2
  %v620 = vadd.f32 %v618, %v619
  %v621 = vrot.slane %v620, 1
  %v622 = vadd.f32 %v620, %v621
  %v623 = vmul.f32 %v592, 1e-12
  %v624 = vmul.f32 %v598, 1e-12
  %v625 = vmul.f32 %v623, %v623
  %v626 = vmul.f32 %v624, %v624
  %v627 = vmax.f32 %v616, %v625
  %v628 = vmax.f32 %v622, %v626
  %v629 = vrsqrt.pop %v627
  %v630 = vrsqrt.pop %v628
  %v631 = vmul.f32 %v584, %v629
  %v632 = vmul.f32 %v586, %v630
  %v633 = vadd.f32 %v631, %v632
  %634 = vadd.xlane.f32.xlu0 %v633
  %v635 = vpop.xlane.xlu0 %634
  %v636 = vmul.f32 %v631, %v482
  %v637 = vmul.f32 %v632, %v483
  %638 = vmatprep.subr.mxu0 %v405
  %639 = vmatpush1.xpose.msra.mxu0 %v404
  %640 = vmatprep.subr.mxu0 %v403
  %641 = vmatpush1.xpose.msra.mxu0 %v402
  %642 = vmatprep.subr.mxu0 %v401
  %643 = vmatpush1.xpose.msra.mxu0 %v400
  %644 = vmatprep.subr.mxu0 %v399
  %645 = vmatpush1.xpose.msra.mxu0 %v398
  %646 = vmatprep.subr.mxu0 %v397
  %647 = vmatpush1.xpose.msra.mxu0 %v396
  %648 = vmatprep.subr.mxu0 %v395
  %649 = vmatpush1.xpose.msra.mxu0 %v394
  %650 = vmatprep.subr.mxu0 %v393
  %651 = vmatpush1.xpose.msra.mxu0 %v392
  %652 = vmatprep.subr.mxu0 %v391
  %653 = vmatpush1.xpose.msra.mxu0 %v390
  %654 = vmatprep.subr.mxu0 %v389
  %655 = vmatpush1.xpose.msra.mxu0 %v388
  %656 = vmatprep.subr.mxu0 %v387
  %657 = vmatpush1.xpose.msra.mxu0 %v386
  %658 = vmatprep.subr.mxu0 %v385
  %659 = vmatpush1.xpose.msra.mxu0 %v384
  %660 = vmatprep.subr.mxu0 %v383
  %661 = vmatpush1.xpose.msra.mxu0 %v382
  %662 = vmatprep.subr.mxu0 %v381
  %663 = vmatpush1.xpose.msra.mxu0 %v380
  %664 = vmatprep.subr.mxu0 %v379
  %665 = vmatpush1.xpose.msra.mxu0 %v378
  %666 = vmatprep.subr.mxu0 %v377
  %667 = vmatpush1.xpose.msra.mxu0 %v376
  %668 = vmatprep.subr.mxu0 %v375
  %669 = vmatpush1.xpose.msra.mxu0 %v374
  %670 = vmatprep.subr.mxu0 0.0
  %671 = vmatpush2.xpose.msra.mxu0 0.0
  %672 = vmatprep.subr.mxu0 0.0
  %673 = vmatpush2.xpose.msra.mxu0 0.0
  %674 = vmatprep.subr.mxu0 0.0
  %675 = vmatpush2.xpose.msra.mxu0 0.0
  %676 = vmatprep.subr.mxu0 0.0
  %677 = vmatpush2.xpose.msra.mxu0 0.0
  %678 = vmatprep.subr.mxu0 0.0
  %679 = vmatpush2.xpose.msra.mxu0 0.0
  %680 = vmatprep.subr.mxu0 0.0
  %681 = vmatpush2.xpose.msra.mxu0 0.0
  %682 = vmatprep.subr.mxu0 0.0
  %683 = vmatpush2.xpose.msra.mxu0 0.0
  %684 = vmatprep.subr.mxu0 0.0
  %685 = vmatpush2.xpose.msra.mxu0 0.0
  %686 = vmatprep.subr.mxu0 0.0
  %687 = vmatpush2.xpose.msra.mxu0 0.0
  %688 = vmatprep.subr.mxu0 0.0
  %689 = vmatpush2.xpose.msra.mxu0 0.0
  %690 = vmatprep.subr.mxu0 0.0
  %691 = vmatpush2.xpose.msra.mxu0 0.0
  %692 = vmatprep.subr.mxu0 0.0
  %693 = vmatpush2.xpose.msra.mxu0 0.0
  %694 = vmatprep.subr.mxu0 0.0
  %695 = vmatpush2.xpose.msra.mxu0 0.0
  %696 = vmatprep.subr.mxu0 0.0
  %697 = vmatpush2.xpose.msra.mxu0 0.0
  %698 = vmatprep.subr.mxu0 0.0
  %699 = vmatpush2.xpose.msra.mxu0 0.0
  %700 = vmatprep.subr.mxu0 0.0
  %701 = vmatpush2.xpose.msra.mxu0 0.0
  %702 = vmatprep.mubr.f32.mxu0 %v637
  %703 = vmatmul.mubr.f32.gmra.mxu0 %v636
  %v704 = vpop.f32.mrf.mxu0
  %v705 = vadd.f32 0.0, %v704
  %v706 = vpop.f32.mrf.mxu0
  %707 = vdwg.mxu0
  %s708 = scalar_lea.vmem [#allocation2], 8
  %v709 = vld [vmem:[%s708] sm:$0xff]
  %v710 = vmul.f32 %v27, %v635
  %v711 = vsub.f32 %v705, %v710
  %v712 = vadd.f32 %v709, %v711
  %713 = vst [vmem:[%s708] sm:$0xff] %v712
  // Predicated region
  $region26: #{netvlad_forward.1} parent=0 // pred_check
    %p714 = pneg %p20
  $region27: #{netvlad_forward.1} parent=0 // pred_check_branch
    %716 = sbr.rel (%p714) target = $region29
  $region28: #{netvlad_forward.1} parent=0 // pred_region
    %v717 = vld [vmem:[#allocation2] sm:$0xff]
    %v718 = vld [vmem:[#allocation2 + $0x8] sm:$0xff]
    %v719 = vmul.f32 %v717, %v717
    %v720 = vmul.f32 %v718, %v718
    %721 = vadd.xlane.f32.xlu0 %v719
    %v722 = vpop.xlane.xlu0 %721
    %723 = vadd.xlane.f32.xlu0 %v720
    %v724 = vpop.xlane.xlu0 %723
    %v725 = vmax.f32 %v722, 1e-24
    %v726 = vmax.f32 %v724, 1e-24
    %v727 = vrsqrt.pop %v725
    %v728 = vrsqrt.pop %v726
    %v729 = vmul.f32 %v717, %v727
    %v730 = vmul.f32 %v718, %v728
    %v731 = vld [vmem:[%s3] sm:$0xff]
    %v732 = vmul.f32 %v729, %v731
    %v733 = vmul.f32 %v730, %v731
    %v734 = vld [vmem:[%s4] sm:$0xff]
    %v735 = vadd.f32 %v732, %v734
    %v736 = vadd.f32 %v733, %v734
    %v737 = vmul.f32 %v735, %v735
    %v738 = vmul.f32 %v736, %v736
    %739 = vadd.xlane.f32.xlu0 %v737
    %v740 = vpop.xlane.xlu0 %739
    %741 = vadd.xlane.f32.xlu0 %v738
    %v742 = vpop.xlane.xlu0 %741
    %v743 = vrot.slane %v740, 4
    %v744 = vadd.f32 %v740, %v743
    %v745 = vrot.slane %v744, 2
    %v746 = vadd.f32 %v744, %v745
    %v747 = vrot.slane %v746, 1
    %v748 = vadd.f32 %v746, %v747
    %v749 = vrot.slane %v742, 4
    %v750 = vadd.f32 %v742, %v749
    %v751 = vrot.slane %v750, 2
    %v752 = vadd.f32 %v750, %v751
    %v753 = vrot.slane %v752, 1
    %v754 = vadd.f32 %v752, %v753
    %v755 = vmax.f32 %v748, 1e-24
    %v756 = vmax.f32 %v754, 1e-24
    %v757 = vrsqrt.pop %v755
    %v758 = vrsqrt.pop %v756
    %v759 = vmul.f32 %v735, %v757
    %v760 = vmul.f32 %v736, %v758
    %761 = vst [vmem:[%s5] sm:$0xff] %v759
    %762 = vst [vmem:[%s5 + $0x8] sm:$0xff] %v760
  $region29: #{netvlad_forward.1} parent=0 // pred_fallthru
    _
  // Predicated region
  $region30: #{netvlad_forward.1} parent=0 // pred_check
    _
  $region31: #{netvlad_forward.1} parent=0 // pred_check_branch
    %764 = sbr.rel (0) target = $region33
  $region32: #{netvlad_forward.1} parent=0 // pred_region
    _
  $region33: #{netvlad_forward.1} parent=0 // pred_fallthru
    _
  // Predicated region
  $region34: #{netvlad_forward.1} parent=0 // pred_check
    _
  $region35: #{netvlad_forward.1} parent=0 // pred_check_branch
    %766 = sbr.rel (0) target = $region37
  $region36: #{netvlad_forward.1} parent=0 // pred_region
    _
  $region37: #{netvlad_forward.1} parent=0 // pred_fallthru
    _

</llo_original>
